<compile_context>
chip_gen: v5e
topology: v5e:2x2
jax: 0.10.0
libtpu: 0.0.40
codegen_flags: <defaults>
</compile_context>

<pallas_src>
import functools

import jax
import jax.numpy as jnp
from jax.experimental import pallas as pl
from jax.experimental.pallas import tpu as pltpu


LN_EPS = 1e-5


def _ffn_kernel(x_ref, w2_ref, o_ref):
    """x_ref:  [TR, H]  row tile of flattened inputs
       w2_ref: [H, H]   PyTorch Linear layout (out, in); contraction on dim 1
       o_ref:  [TR, H]
    """
    x = x_ref[...]
    # fc2(inputs) == x @ W2.T : contract x dim 1 with w2 dim 1, f32 accum on MXU.
    y = jax.lax.dot_general(
        x, w2_ref[...],
        dimension_numbers=(((1,), (1,)), ((), ())),
        preferred_element_type=jnp.float32)

    # Residual add (residual = original inputs), in f32.
    z = y + x.astype(jnp.float32)

    # LayerNorm over last dim, gamma=1, beta=0, eps=1e-5 — fused one-pass stats.
    inv_h = 1.0 / z.shape[-1]  # static
    s1 = jnp.sum(z, axis=-1, keepdims=True)
    s2 = jnp.sum(z * z, axis=-1, keepdims=True)
    mean = s1 * inv_h
    var = s2 * inv_h - mean * mean
    inv = jax.lax.rsqrt(var + LN_EPS)
    o_ref[...] = ((z - mean) * inv).astype(o_ref.dtype)


def _pick_row_tile(R, H, vmem_budget_bytes=12 * 1024 * 1024):
    """Largest row tile (multiple of 8, <=1024) that fits a conservative VMEM
    budget: the resident (H, H) f32 weight plus 4 row slabs of (TR, H) f32
    (double-buffered input stream + double-buffered output stream).  The
    budget stays below the smallest default scoped-VMEM limit (v5e: 16 MiB),
    so no vmem_limit_bytes override is required on any chip.  Measured data
    shows row tiles of 512-1024 already sit at ~85% of the HBM roofline for
    this memory-bound shape, so a larger cap buys nothing."""
    avail = max(vmem_budget_bytes - H * H * 4, 8 * H * 4 * 4)
    max_rows = avail // (4 * H * 4)          # 4 row-streams of H f32 each
    tr = min(max(R, 8), 1024, max_rows)
    tr = max(8, (tr // 8) * 8)
    return int(tr)


def poswise_ffn(inputs, w1, w2):
    """inputs: [B, S, H].  w1, w2: [H, H] in PyTorch Linear weight layout
    (out = x @ W.T).  w1 is unused by the reference forward (its result is
    discarded) but kept in the signature for parity with the module."""
    del w1  # fc1 / dropout / relu outputs are discarded in the reference forward
    B, S, H = inputs.shape
    R = B * S
    x2d = inputs.reshape(R, H)

    TR = _pick_row_tile(R, H)
    num_tiles = pl.cdiv(R, TR)
    Rp = num_tiles * TR
    if Rp != R:
        # Zero rows are harmless: z=0 -> mean=0, var=0 -> padded rows come out 0.
        x2d = jnp.pad(x2d, ((0, Rp - R), (0, 0)))

    out2d = pl.pallas_call(
        _ffn_kernel,
        out_shape=jax.ShapeDtypeStruct((Rp, H), inputs.dtype),
        grid_spec=pl.GridSpec(
            grid=(num_tiles,),
            in_specs=[
                pl.BlockSpec((TR, H), lambda i: (i, 0)),   # streaming row tiles
                pl.BlockSpec((H, H), lambda i: (0, 0)),    # resident weight
            ],
            out_specs=pl.BlockSpec((TR, H), lambda i: (i, 0)),
        ),
        compiler_params=pltpu.CompilerParams(
            dimension_semantics=("parallel",)),  # independent rows; v7x 2-TC shard
    )(x2d, w2)

    if Rp != R:
        out2d = out2d[:R]
    return out2d.reshape(B, S, H)


def _reference(inputs, w2):
    # Pure-JAX reference of the effective PyTorch semantics.
    y = jnp.einsum("bsh,oh->bso", inputs, w2) + inputs
    mean = jnp.mean(y, axis=-1, keepdims=True)
    var = jnp.mean((y - mean) ** 2, axis=-1, keepdims=True)
    return (y - mean) / jnp.sqrt(var + LN_EPS)


if __name__ == "__main__":
    key = jax.random.PRNGKey(0)
    k_x, k_w1, k_w2 = jax.random.split(key, 3)

    B, S, H = 2, 8, 128  # small shapes; H=128 keeps the lane dim full-width
    inputs = jax.random.normal(k_x, (B, S, H), dtype=jnp.float32)

    # Deterministic parameter init (kaiming-uniform-like bound = 1/sqrt(H)),
    # matching nn.Linear(H, H, bias=False) weight shape [out, in].
    bound = 1.0 / (H ** 0.5)
    w1 = jax.random.uniform(k_w1, (H, H), jnp.float32, -bound, bound)
    w2 = jax.random.uniform(k_w2, (H, H), jnp.float32, -bound, bound)

    run = jax.jit(functools.partial(poswise_ffn))
    out = run(inputs, w1, w2)
    jax.block_until_ready(out)

    ref = _reference(inputs, w2)
    assert out.shape == (B, S, H)
    assert jnp.allclose(out, ref, atol=2e-4, rtol=2e-4)

    print("KERNEL_OK")
</pallas_src>

<mosaic_0001>
module attributes {stable_mosaic.version = 11 : i64} {
  func.func @_ffn_kernel(%arg0: i32, %arg1: memref<16x128xf32, #tpu.memory_space<vmem>>, %arg2: memref<128x128xf32, #tpu.memory_space<vmem>>, %arg3: memref<16x128xf32, #tpu.memory_space<vmem>>) attributes {dimension_semantics = [#tpu.dimension_semantics<parallel>], iteration_bounds = array<i64: 1>, scalar_prefetch = 0 : i64, scratch_operands = 0 : i64, tpu.core_type = #tpu.core_type<tc>, window_params = [{transform_indices = @transform_0, window_bounds = array<i64: 16, 128>}, {pipeline_mode = #tpu.pipeline_mode<synchronous>, transform_indices = @transform_1, window_bounds = array<i64: 128, 128>}, {transform_indices = @transform_2, window_bounds = array<i64: 16, 128>}]} {
    %c0 = arith.constant 0 : index
    %c0_0 = arith.constant 0 : index
    %0 = vector.load %arg1[%c0, %c0_0] : memref<16x128xf32, #tpu.memory_space<vmem>>, vector<16x128xf32>
    %c0_1 = arith.constant 0 : index
    %c0_2 = arith.constant 0 : index
    %1 = vector.load %arg2[%c0_1, %c0_2] : memref<128x128xf32, #tpu.memory_space<vmem>>, vector<128x128xf32>
    %cst = arith.constant dense<0.000000e+00> : vector<16x128xf32>
    %2 = tpu.matmul %0, %1, %cst {dimension_numbers = #tpu.dot_dimension_numbers<[1], [1], [0], [0], [0, 0, 1, 0], [], []>} : vector<16x128xf32>, vector<128x128xf32>, vector<16x128xf32> -> vector<16x128xf32>
    %3 = arith.addf %2, %0 : vector<16x128xf32>
    %cst_3 = arith.constant dense<0.000000e+00> : vector<16xf32>
    %4 = vector.multi_reduction <add>, %3, %cst_3 [1] : vector<16x128xf32> to vector<16xf32>
    %5 = vector.shape_cast %4 : vector<16xf32> to vector<16x1xf32>
    %6 = arith.mulf %3, %3 : vector<16x128xf32>
    %cst_4 = arith.constant dense<0.000000e+00> : vector<16xf32>
    %7 = vector.multi_reduction <add>, %6, %cst_4 [1] : vector<16x128xf32> to vector<16xf32>
    %8 = vector.shape_cast %7 : vector<16xf32> to vector<16x1xf32>
    %cst_5 = arith.constant 7.812500e-03 : f32
    %9 = vector.broadcast %cst_5 : f32 to vector<16x1xf32>
    %10 = arith.mulf %5, %9 : vector<16x1xf32>
    %cst_6 = arith.constant 7.812500e-03 : f32
    %11 = vector.broadcast %cst_6 : f32 to vector<16x1xf32>
    %12 = arith.mulf %8, %11 : vector<16x1xf32>
    %13 = arith.mulf %10, %10 : vector<16x1xf32>
    %14 = arith.subf %12, %13 : vector<16x1xf32>
    %cst_7 = arith.constant 9.99999974E-6 : f32
    %15 = vector.broadcast %cst_7 : f32 to vector<16x1xf32>
    %16 = arith.addf %14, %15 : vector<16x1xf32>
    %17 = math.rsqrt %16 : vector<16x1xf32>
    %18 = vector.broadcast %10 : vector<16x1xf32> to vector<16x128xf32>
    %19 = arith.subf %3, %18 : vector<16x128xf32>
    %20 = vector.broadcast %17 : vector<16x1xf32> to vector<16x128xf32>
    %21 = arith.mulf %19, %20 : vector<16x128xf32>
    %c0_8 = arith.constant 0 : index
    %c0_9 = arith.constant 0 : index
    %22 = vector.load %arg3[%c0_8, %c0_9] : memref<16x128xf32, #tpu.memory_space<vmem>>, vector<16x128xf32>
    tpu.vector_store %arg3[%c0_8, %c0_9], %21 {strides = array<i32>} : memref<16x128xf32, #tpu.memory_space<vmem>>, vector<16x128xf32>,
    return
  }
  func.func @transform_0(%arg0: i32) -> (i32, i32) {
    %c0_i32 = arith.constant 0 : i32
    %c0_i32_0 = arith.constant 0 : i32
    return %arg0, %c0_i32 : i32, i32
  }
  func.func @transform_1(%arg0: i32) -> (i32, i32) {
    %c0_i32 = arith.constant 0 : i32
    %c0_i32_0 = arith.constant 0 : i32
    %c0_i32_1 = arith.constant 0 : i32
    return %c0_i32, %c0_i32_0 : i32, i32
  }
  func.func @transform_2(%arg0: i32) -> (i32, i32) {
    %c0_i32 = arith.constant 0 : i32
    %c0_i32_0 = arith.constant 0 : i32
    return %arg0, %c0_i32 : i32, i32
  }
}

</mosaic_0001>

<llo_original>
// kernel: poswise_ffn.1
$region0: #{poswise_ffn.1}
  #allocation0 [shape = 'u32[]', space=smem, size = 0x4, offset = 0x4, fixed_abs, tag = 'smem constant byte address 0x4 - core index']
  #allocation1 [shape = 'u32[72,128]{1,0:T(1,128)}', space=vmem, size = 0x9000, scoped, tag = 'internal scratch']
  %s0 = inlined_call_operand.hbm [shape: f32[16,128], index: 0, kind: input, shape index: {}]
  %s1 = inlined_call_operand.hbm [shape: f32[128,128], index: 1, kind: input, shape index: {}]
  %s2 = inlined_call_operand.hbm [shape: f32[16,128], index: 2, kind: output, shape index: {}]
  %s3 = sld [smem:[#allocation0]]
  $region26: #{poswise_ffn.1} parent=0
    _
  %s5 = ssub.s32 1, %s3
  %s6 = scalar_select 0, %s5, %s3
  $region1: #{poswise_ffn.1} parent=0
    #allocation2 [shape = 'u8[8192]{0}', space=vmem, size = 0x2000, scoped, tag = 'input window, operand 0, single buffered']
    #allocation3 [shape = 's32[1]{0}', space=sflag, size = 0x4, scoped, tag = 'scoped memory for poswise_ffn.1']
    #allocation4 [shape = 's32[1]{0}', space=sflag, size = 0x4, scoped, tag = 'scoped memory for poswise_ffn.1']
    #allocation5 [shape = 'u8[65536]{0}', space=vmem, size = 0x10000, scoped, tag = 'input window, operand 1, single buffered']
    #allocation6 [shape = 's32[1]{0}', space=sflag, size = 0x4, scoped, tag = 'scoped memory for poswise_ffn.1']
    #allocation7 [shape = 'u8[8192]{0}', space=vmem, size = 0x2000, scoped, tag = 'output window, operand 0, single buffered']
    %7 = vsyncpa [#allocation3], 0
    %8 = vsyncpa [#allocation6], 0
    %9 = vsyncpa [#allocation4], 0
    // Predicated region
    $region2: #{poswise_ffn.1} parent=1 // pred_check
      _
    $region3: #{poswise_ffn.1} parent=1 // pred_check_branch
      %11 = sbr.rel (0) target = $region5
    $region4: #{poswise_ffn.1} parent=1 // pred_region
      %13 = vsyncadd [#allocation3], 0
      %s14 = sshll.u32 %s0, 4
      %s15 = int_to_ptr.hbm [resolvable:$true] %s14
      %s16 = sshll.u32 [#allocation2], 4
      %s17 = int_to_ptr.vmem [resolvable:$true] %s16
      %22 = dma.hbm_to_vmem [thread:$0]  %s15, 256, %s17, [#allocation3], 128, 128, 8
    $region5: #{poswise_ffn.1} parent=1 // pred_fallthru
      _
    // Predicated region
    $region6: #{poswise_ffn.1} parent=1 // pred_check
      _
    $region7: #{poswise_ffn.1} parent=1 // pred_check_branch
      %24 = sbr.rel (0) target = $region9
    $region8: #{poswise_ffn.1} parent=1 // pred_region
      %26 = vsyncadd [#allocation6], 0
      %s27 = sshll.u32 %s1, 4
      %s28 = int_to_ptr.hbm [resolvable:$true] %s27
      %s29 = sshll.u32 [#allocation5], 4
      %s30 = int_to_ptr.vmem [resolvable:$true] %s29
      %35 = dma.hbm_to_vmem [thread:$0]  %s28, 2048, %s30, [#allocation6], 128, 128, 8
    $region9: #{poswise_ffn.1} parent=1 // pred_fallthru
      _
    // Predicated region
    $region10: #{poswise_ffn.1} parent=1 // pred_check
      _
    $region11: #{poswise_ffn.1} parent=1 // pred_check_branch
      %37 = sbr.rel (0) target = $region13
    $region12: #{poswise_ffn.1} parent=1 // pred_region
      %39 = dma.done [#allocation3], 256
    $region13: #{poswise_ffn.1} parent=1 // pred_fallthru
      _
    // Predicated region
    $region14: #{poswise_ffn.1} parent=1 // pred_check
      _
    $region15: #{poswise_ffn.1} parent=1 // pred_check_branch
      %41 = sbr.rel (0) target = $region17
    $region16: #{poswise_ffn.1} parent=1 // pred_region
      %43 = dma.done [#allocation6], 2048
    $region17: #{poswise_ffn.1} parent=1 // pred_fallthru
      _
    %v44 = vld [vmem:[#allocation2] sm:$0xff]
    %v45 = vld [vmem:[#allocation2 + $0x8] sm:$0xff]
    %v46 = vld [vmem:[#allocation5] sm:$0xff]
    %v47 = vld [vmem:[#allocation5 + $0x8] sm:$0xff]
    %v48 = vld [vmem:[#allocation5 + $0x10] sm:$0xff]
    %v49 = vld [vmem:[#allocation5 + $0x18] sm:$0xff]
    %v50 = vld [vmem:[#allocation5 + $0x20] sm:$0xff]
    %v51 = vld [vmem:[#allocation5 + $0x28] sm:$0xff]
    %v52 = vld [vmem:[#allocation5 + $0x30] sm:$0xff]
    %v53 = vld [vmem:[#allocation5 + $0x38] sm:$0xff]
    %v54 = vld [vmem:[#allocation5 + $0x40] sm:$0xff]
    %v55 = vld [vmem:[#allocation5 + $0x48] sm:$0xff]
    %v56 = vld [vmem:[#allocation5 + $0x50] sm:$0xff]
    %v57 = vld [vmem:[#allocation5 + $0x58] sm:$0xff]
    %v58 = vld [vmem:[#allocation5 + $0x60] sm:$0xff]
    %v59 = vld [vmem:[#allocation5 + $0x68] sm:$0xff]
    %v60 = vld [vmem:[#allocation5 + $0x70] sm:$0xff]
    %v61 = vld [vmem:[#allocation5 + $0x78] sm:$0xff]
    %62 = vmatpush.xpose.msra.mxu0 %v61
    %63 = vmatpush.xpose.msra.mxu0 %v60
    %64 = vmatpush.xpose.msra.mxu0 %v59
    %65 = vmatpush.xpose.msra.mxu0 %v58
    %66 = vmatpush.xpose.msra.mxu0 %v57
    %67 = vmatpush.xpose.msra.mxu0 %v56
    %68 = vmatpush.xpose.msra.mxu0 %v55
    %69 = vmatpush.xpose.msra.mxu0 %v54
    %70 = vmatpush.xpose.msra.mxu0 %v53
    %71 = vmatpush.xpose.msra.mxu0 %v52
    %72 = vmatpush.xpose.msra.mxu0 %v51
    %73 = vmatpush.xpose.msra.mxu0 %v50
    %74 = vmatpush.xpose.msra.mxu0 %v49
    %75 = vmatpush.xpose.msra.mxu0 %v48
    %76 = vmatpush.xpose.msra.mxu0 %v47
    %77 = vmatpush.xpose.msra.mxu0 %v46
    %78 = vmatmul.f32.gmra.mxu0 %v44
    %v79 = vpop.f32.mrf.mxu0
    %v80 = vadd.f32 %v44, %v79
    %81 = vmatmul.f32.gmra.mxu0 %v45
    %v82 = vpop.f32.mrf.mxu0
    %v83 = vadd.f32 %v45, %v82
    %84 = vdwg.mxu0
    %85 = vadd.xlane.f32.xlu0 %v80
    %v86 = vpop.xlane.xlu0 %85
    %87 = vadd.xlane.f32.xlu0 %v83
    %v88 = vpop.xlane.xlu0 %87
    %v89 = vmul.f32 %v80, %v80
    %v90 = vmul.f32 %v83, %v83
    %91 = vadd.xlane.f32.xlu0 %v89
    %v92 = vpop.xlane.xlu0 %91
    %93 = vadd.xlane.f32.xlu0 %v90
    %v94 = vpop.xlane.xlu0 %93
    %v95 = vmul.f32 %v86, 0.0078125
    %v96 = vmul.f32 %v88, 0.0078125
    %v97 = vmul.f32 %v92, 0.0078125
    %v98 = vmul.f32 %v94, 0.0078125
    %v99 = vmul.f32 %v95, %v95
    %v100 = vmul.f32 %v96, %v96
    %v101 = vsub.f32 %v97, %v99
    %v102 = vsub.f32 %v98, %v100
    %v103 = vadd.f32 %v101, 1e-05
    %v104 = vadd.f32 %v102, 1e-05
    %v105 = vrsqrt.pop %v103
    %v106 = vmul.f32 %v105, %v103
    %v107 = vmul.f32 %v106, %v105
    %v108 = vmul.f32 0.5, %v107
    %v109 = vsub.f32 1.5, %v108
    %v110 = vmul.f32 %v105, %v109
    %vm111 = vweird.f32 %v103
    %vm112 = vweird.f32 %v105
    %vm113 = vmor %vm111, %vm112
    %v114 = vsel %vm113, %v105, %v110
    %v115 = vrsqrt.pop %v104
    %v116 = vmul.f32 %v115, %v104
    %v117 = vmul.f32 %v116, %v115
    %v118 = vmul.f32 0.5, %v117
    %v119 = vsub.f32 1.5, %v118
    %v120 = vmul.f32 %v115, %v119
    %vm121 = vweird.f32 %v104
    %vm122 = vweird.f32 %v115
    %vm123 = vmor %vm121, %vm122
    %v124 = vsel %vm123, %v115, %v120
    %v125 = vsub.f32 %v80, %v95
    %v126 = vsub.f32 %v83, %v96
    %v127 = vmul.f32 %v125, %v114
    %v128 = vmul.f32 %v126, %v124
    %129 = vst [vmem:[#allocation7] sm:$0xff] %v127
    %130 = vst [vmem:[#allocation7 + $0x8] sm:$0xff] %v128
    // Predicated region
    $region18: #{poswise_ffn.1} parent=1 // pred_check
      _
    $region19: #{poswise_ffn.1} parent=1 // pred_check_branch
      %132 = sbr.rel (0) target = $region21
    $region20: #{poswise_ffn.1} parent=1 // pred_region
      %134 = vsyncadd [#allocation4], 0
      %s135 = sshll.u32 [#allocation7], 4
      %s136 = int_to_ptr.vmem [resolvable:$true] %s135
      %s137 = sshll.u32 %s2, 4
      %s138 = int_to_ptr.hbm [resolvable:$true] %s137
      %143 = dma.vmem_to_hbm [thread:$0]  %s136, 256, %s138, [#allocation4], 128, 128, 8
    $region21: #{poswise_ffn.1} parent=1 // pred_fallthru
      _
    // Predicated region
    $region22: #{poswise_ffn.1} parent=1 // pred_check
      _
    $region23: #{poswise_ffn.1} parent=1 // pred_check_branch
      %145 = sbr.rel (0) target = $region25
    $region24: #{poswise_ffn.1} parent=1 // pred_region
      %147 = dma.done [#allocation4], 256
    $region25: #{poswise_ffn.1} parent=1 // pred_fallthru
      _
    %148 = vsyncpa [#allocation3], 1
    %149 = vsyncpa [#allocation6], 1
    %150 = vsyncpa [#allocation4], 1

</llo_original>
